<compile_context>
chip_gen: v7x
topology: tpu7x:2x2x1
jax: 0.10.0
libtpu: 0.0.40
codegen_flags: <defaults>
</compile_context>

<pallas_src>
import math
import functools

import jax
import jax.numpy as jnp
from jax import lax
from jax.experimental import pallas as pl
from jax.experimental.pallas import tpu as pltpu


def _pair(v):
    return tuple(v) if isinstance(v, (tuple, list)) else (v, v)


def _out_size(size, k, s, p, d):
    return (size + 2 * p - d * (k - 1) - 1) // s + 1


def _round_up(x, m):
    return (x + m - 1) // m * m


def _p_tiling(P, max_tile=512):
    """Lane-dense tile over the output-pixel axis (multiple of 128)."""
    tp = min(max_tile, _round_up(P, 128))
    p_pad = _round_up(P, tp)
    return tp, p_pad


# --------------------------------------------------------------------------
# Pallas kernel: modulated deformable conv2d (DCNv2), groups=1, dg=1
# --------------------------------------------------------------------------
def _dcn_kernel(x_ref, offy_ref, offx_ref, mask_ref, w_ref, b_ref, out_ref, *,
                H, W, Cin, Wout, kh, kw, stride, padding, dilation,
                tile_p, mxu_dtype):
    TP = tile_p
    t = pl.program_id(1)

    x_t = x_ref[0]        # (Cin*W, H)   row = c*W + w, mxu_dtype
    offy = offy_ref[0]    # (K2, TP) f32
    offx = offx_ref[0]    # (K2, TP) f32
    mask = mask_ref[0]    # (K2, TP) f32

    # output-pixel coordinates for this tile, lane-dense (1, TP)
    p_glb = lax.broadcasted_iota(jnp.int32, (1, TP), 1) + t * TP
    oy = (p_glb // Wout).astype(jnp.float32)
    ox = (p_glb % Wout).astype(jnp.float32)

    h_iota = lax.broadcasted_iota(jnp.int32, (H, TP), 0)
    w_iota = lax.broadcasted_iota(jnp.int32, (W, TP), 0)

    col_parts = []  # K2*Cin pieces of (1, TP); row order = k*Cin + c
    for k in range(kh * kw):
        i, j = k // kw, k % kw
        dy = offy[k:k + 1, :]   # (1, TP)
        dx = offx[k:k + 1, :]
        m = mask[k:k + 1, :]

        # coordinate math stays in f32
        py = oy * stride[0] - padding[0] + i * dilation[0] + dy
        px = ox * stride[1] - padding[1] + j * dilation[1] + dx
        y0f = jnp.floor(py)
        x0f = jnp.floor(px)
        ly = py - y0f
        lx = px - x0f
        y0 = y0f.astype(jnp.int32)
        x0 = x0f.astype(jnp.int32)

        # Separable bilinear weights; out-of-bounds corners get zero weight
        # (matches DCNv2 zero-padding semantics).  Modulation mask folded into wx.
        wyT = (jnp.where(h_iota == y0, 1.0 - ly, 0.0)
               + jnp.where(h_iota == y0 + 1, ly, 0.0))               # (H, TP)
        wxT = ((jnp.where(w_iota == x0, 1.0 - lx, 0.0)
                + jnp.where(w_iota == x0 + 1, lx, 0.0)) * m)         # (W, TP)

        # stage 1: contract over H on the MXU -> (Cin*W, TP)
        rows = jnp.dot(x_t, wyT.astype(mxu_dtype),
                       preferred_element_type=jnp.float32)

        # stage 2: weighted reduce over W on the VPU (per channel)
        for c in range(Cin):
            rc = rows[c * W:(c + 1) * W, :]                          # (W, TP)
            col_parts.append(jnp.sum(rc * wxT, axis=0, keepdims=True))

    # Fused tap GEMM: one (Cout, K2*Cin) @ (K2*Cin, TP) contraction.
    col = jnp.concatenate(col_parts, axis=0)                         # (K2*Cin, TP)
    out = jnp.dot(w_ref[...], col.astype(mxu_dtype),
                  preferred_element_type=jnp.float32) + b_ref[...]   # (Cout, TP)
    out_ref[0] = out.astype(out_ref.dtype)


def modulated_deform_conv2d(x, off_y, off_x, mask, weight, bias,
                            stride, padding, dilation, mxu_dtype=jnp.float32):
    """x: (N,Cin,H,W); off_y/off_x/mask: (N,K2,Hout,Wout);
    weight: (Cout,Cin,kh,kw); bias: (Cout,).  Returns (N,Cout,Hout,Wout)."""
    N, Cin, H, W = x.shape
    Cout, _, kh, kw = weight.shape
    K2 = kh * kw
    Hout = _out_size(H, kh, stride[0], padding[0], dilation[0])
    Wout = _out_size(W, kw, stride[1], padding[1], dilation[1])
    P = Hout * Wout
    tp, p_pad = _p_tiling(P)

    # channel/width-major resident input plane: x_t[n, c*W + w, h] = x[n, c, h, w]
    x_t = jnp.transpose(x, (0, 1, 3, 2)).reshape(N, Cin * W, H).astype(mxu_dtype)

    def prep(a):  # lane-dense (N, K2, Ppad), f32 for coordinate math
        a = a.reshape(N, K2, P).astype(jnp.float32)
        if p_pad != P:
            a = jnp.pad(a, ((0, 0), (0, 0), (0, p_pad - P)))
        return a

    offy, offx, msk = prep(off_y), prep(off_x), prep(mask)

    # wT[o, k*Cin + c] = weight[o, c, i, j] with k = i*kw + j
    wT = jnp.transpose(weight, (0, 2, 3, 1)).reshape(Cout, K2 * Cin).astype(mxu_dtype)
    b2 = bias.reshape(Cout, 1).astype(jnp.float32)

    kernel = functools.partial(
        _dcn_kernel, H=H, W=W, Cin=Cin, Wout=Wout, kh=kh, kw=kw,
        stride=stride, padding=padding, dilation=dilation,
        tile_p=tp, mxu_dtype=mxu_dtype)

    out = pl.pallas_call(
        kernel,
        out_shape=jax.ShapeDtypeStruct((N, Cout, p_pad), jnp.float32),
        grid_spec=pltpu.PrefetchScalarGridSpec(
            num_scalar_prefetch=0,
            grid=(N, p_pad // tp),
            in_specs=[
                pl.BlockSpec((1, Cin * W, H), lambda n, t: (n, 0, 0)),   # resident
                pl.BlockSpec((1, K2, tp), lambda n, t: (n, 0, t)),
                pl.BlockSpec((1, K2, tp), lambda n, t: (n, 0, t)),
                pl.BlockSpec((1, K2, tp), lambda n, t: (n, 0, t)),
                pl.BlockSpec((Cout, K2 * Cin), lambda n, t: (0, 0)),     # resident
                pl.BlockSpec((Cout, 1), lambda n, t: (0, 0)),            # resident
            ],
            out_specs=pl.BlockSpec((1, Cout, tp), lambda n, t: (n, 0, t)),
        ),
        compiler_params=pltpu.CompilerParams(
            dimension_semantics=("parallel", "parallel"),
            # per-tile working set is tiny; 32 MiB fits every chip incl. v7x
            vmem_limit_bytes=32 * 1024 * 1024),
    )(x_t, offy, offx, msk, wT, b2)

    # output is already channel-major -> plain reshape to NCHW, no transpose
    return out[:, :, :P].reshape(N, Cout, Hout, Wout)


# --------------------------------------------------------------------------
# Plain Conv2d (conv_offset_mask): JAX im2col + Pallas GEMM kernel
# --------------------------------------------------------------------------
def _conv_gemm_kernel(col_ref, w_ref, b_ref, out_ref):
    out = jnp.dot(w_ref[...], col_ref[0], preferred_element_type=jnp.float32)
    out_ref[0] = (out + b_ref[...]).astype(out_ref.dtype)


def _im2col(x, kh, kw, stride, padding, dilation):
    N, Cin, H, W = x.shape
    Hout = _out_size(H, kh, stride[0], padding[0], dilation[0])
    Wout = _out_size(W, kw, stride[1], padding[1], dilation[1])
    xp = jnp.pad(x, ((0, 0), (0, 0), (padding[0],) * 2, (padding[1],) * 2))
    patches = []
    for i in range(kh):
        for j in range(kw):
            ys, xs = i * dilation[0], j * dilation[1]
            patches.append(lax.slice(
                xp, (0, 0, ys, xs),
                (N, Cin, ys + (Hout - 1) * stride[0] + 1,
                 xs + (Wout - 1) * stride[1] + 1),
                (1, 1, stride[0], stride[1])))            # (N, Cin, Hout, Wout)
    col = jnp.stack(patches, axis=1)                      # (N, K2, Cin, Hout, Wout)
    return col.reshape(N, kh * kw * Cin, Hout * Wout), Hout, Wout


def conv2d_nchw(x, weight, bias, stride, padding, dilation=(1, 1)):
    N, Cin, H, W = x.shape
    Cout, _, kh, kw = weight.shape
    K2 = kh * kw
    col, Hout, Wout = _im2col(x.astype(jnp.float32), kh, kw, stride, padding, dilation)
    P = Hout * Wout
    tp, p_pad = _p_tiling(P)
    if p_pad != P:
        col = jnp.pad(col, ((0, 0), (0, 0), (0, p_pad - P)))

    w_flat = jnp.transpose(weight, (0, 2, 3, 1)).reshape(Cout, K2 * Cin).astype(jnp.float32)
    b2 = bias.reshape(Cout, 1).astype(jnp.float32)

    out = pl.pallas_call(
        _conv_gemm_kernel,
        out_shape=jax.ShapeDtypeStruct((N, Cout, p_pad), jnp.float32),
        grid_spec=pltpu.PrefetchScalarGridSpec(
            num_scalar_prefetch=0,
            grid=(N, p_pad // tp),
            in_specs=[
                pl.BlockSpec((1, K2 * Cin, tp), lambda n, t: (n, 0, t)),
                pl.BlockSpec((Cout, K2 * Cin), lambda n, t: (0, 0)),
                pl.BlockSpec((Cout, 1), lambda n, t: (0, 0)),
            ],
            out_specs=pl.BlockSpec((1, Cout, tp), lambda n, t: (n, 0, t)),
        ),
        compiler_params=pltpu.CompilerParams(
            dimension_semantics=("parallel", "parallel"),
            vmem_limit_bytes=32 * 1024 * 1024),
    )(col, w_flat, b2)
    return out[:, :, :P].reshape(N, Cout, Hout, Wout)


# --------------------------------------------------------------------------
# Module wrapper (ModulatedDeformConvPack forward)
# --------------------------------------------------------------------------
class ModulatedDeformConvPackPallas:
    def __init__(self, in_channels, out_channels, kernel_size, stride, padding,
                 dilation=1, groups=1, deformable_groups=1, key=None,
                 mxu_dtype=jnp.float32):
        # TODO(synk): groups > 1 (grouped GEMM) not implemented in the kernel.
        assert groups == 1
        # TODO(synk): deformable_groups > 1 (per-group offset planes) not implemented.
        assert deformable_groups == 1
        self.in_channels = in_channels
        self.out_channels = out_channels
        self.kernel_size = _pair(kernel_size)
        self.stride = _pair(stride)
        self.padding = _pair(padding)
        self.dilation = _pair(dilation)
        self.deformable_groups = deformable_groups
        self.mxu_dtype = mxu_dtype   # set to jnp.bfloat16 on v6e/v7x for MXU speed

        kh, kw = self.kernel_size
        fan_in = in_channels * kh * kw
        bound = 1.0 / math.sqrt(fan_in)
        k0, k1, k2, k3 = jax.random.split(key, 4)
        # kaiming_uniform_(a=sqrt(5))  ==  U(-1/sqrt(fan_in), 1/sqrt(fan_in))
        self.weight = jax.random.uniform(
            k0, (out_channels, in_channels, kh, kw), jnp.float32, -bound, bound)
        self.bias = jax.random.uniform(
            k1, (out_channels,), jnp.float32, -bound, bound)

        c_off = deformable_groups * 3 * kh * kw
        # NOTE: the PyTorch module zero-inits conv_offset_mask (init_offset);
        # we use small deterministic random values so the deformable bilinear
        # sampling path is actually exercised.
        self.w_cm = 0.1 * jax.random.normal(
            k2, (c_off, in_channels, kh, kw), jnp.float32)
        self.b_cm = 0.1 * jax.random.normal(k3, (c_off,), jnp.float32)

    # ---- forward (Pallas) -------------------------------------------------
    def __call__(self, input_offset, input_real):
        N = input_offset.shape[0]
        kh, kw = self.kernel_size
        K2 = kh * kw

        # conv_offset_mask: plain conv via im2col + Pallas GEMM (NOT the deform kernel)
        out_cm = conv2d_nchw(input_offset, self.w_cm, self.b_cm,
                             self.stride, self.padding, (1, 1))
        o1, o2, mask_logits = jnp.split(out_cm, 3, axis=1)
        offset = jnp.concatenate([o1, o2], axis=1)        # (N, 2*K2, Hcm, Wcm)
        mask = jax.nn.sigmoid(mask_logits)                # (N, K2, Hcm, Wcm)

        # DCNv2 convention: within each deformable group, channel 2k is the
        # y-offset and channel 2k+1 is the x-offset of kernel tap k.
        Hcm, Wcm = out_cm.shape[2], out_cm.shape[3]
        off_pairs = offset.reshape(N, K2, 2, Hcm, Wcm)
        off_y = off_pairs[:, :, 0]
        off_x = off_pairs[:, :, 1]

        out = modulated_deform_conv2d(
            input_real, off_y, off_x, mask,
            self.weight, self.bias, self.stride, self.padding, self.dilation,
            mxu_dtype=self.mxu_dtype)
        return out, offset

    # ---- pure-JAX reference (for correctness check) -----------------------
    def reference(self, input_offset, input_real):
        N = input_offset.shape[0]
        kh, kw = self.kernel_size
        K2 = kh * kw
        out_cm = lax.conv_general_dilated(
            input_offset, self.w_cm,
            window_strides=self.stride,
            padding=[(self.padding[0],) * 2, (self.padding[1],) * 2],
            dimension_numbers=('NCHW', 'OIHW', 'NCHW'),
            precision=lax.Precision.HIGHEST) + self.b_cm.reshape(1, -1, 1, 1)
        o1, o2, mask_logits = jnp.split(out_cm, 3, axis=1)
        offset = jnp.concatenate([o1, o2], axis=1)
        mask = jax.nn.sigmoid(mask_logits)
        Hcm, Wcm = out_cm.shape[2], out_cm.shape[3]
        off_pairs = offset.reshape(N, K2, 2, Hcm, Wcm)
        out = _ref_modulated_deform_conv(
            input_real, off_pairs[:, :, 0], off_pairs[:, :, 1], mask,
            self.weight, self.bias, self.stride, self.padding, self.dilation)
        return out, offset


def _ref_modulated_deform_conv(x, off_y, off_x, mask, weight, bias,
                               stride, padding, dilation):
    N, Cin, H, W = x.shape
    Cout, _, kh, kw = weight.shape
    Hout = _out_size(H, kh, stride[0], padding[0], dilation[0])
    Wout = _out_size(W, kw, stride[1], padding[1], dilation[1])
    P = Hout * Wout
    x_flat = x.reshape(N, Cin, H * W)
    oy = jnp.arange(Hout, dtype=jnp.float32).reshape(Hout, 1) * stride[0] - padding[0]
    ox = jnp.arange(Wout, dtype=jnp.float32).reshape(1, Wout) * stride[1] - padding[1]
    out = jnp.zeros((N, Cout, Hout, Wout), jnp.float32)
    for k in range(kh * kw):
        i, j = k // kw, k % kw
        py = oy + i * dilation[0] + off_y[:, k]
        px = ox + j * dilation[1] + off_x[:, k]
        y0 = jnp.floor(py)
        x0 = jnp.floor(px)
        ly, lx = py - y0, px - x0
        y0 = y0.astype(jnp.int32)
        x0 = x0.astype(jnp.int32)
        val = jnp.zeros((N, Cin, P), jnp.float32)
        corners = [(y0, x0, (1 - ly) * (1 - lx)), (y0, x0 + 1, (1 - ly) * lx),
                   (y0 + 1, x0, ly * (1 - lx)), (y0 + 1, x0 + 1, ly * lx)]
        for yy, xx, wgt in corners:
            valid = (yy >= 0) & (yy < H) & (xx >= 0) & (xx < W)
            idx = jnp.clip(yy, 0, H - 1) * W + jnp.clip(xx, 0, W - 1)
            v = jnp.take_along_axis(x_flat, idx.reshape(N, 1, P), axis=2)
            val = val + jnp.where(valid.reshape(N, 1, P),
                                  wgt.reshape(N, 1, P), 0.0) * v
        col = val * mask[:, k].reshape(N, 1, P)
        out = out + jnp.einsum('ncp,oc->nop', col, weight[:, :, i, j],
                               precision=lax.Precision.HIGHEST
                               ).reshape(N, Cout, Hout, Wout)
    return out + bias.reshape(1, Cout, 1, 1)


if __name__ == "__main__":
    N, Cin, H, W = 2, 4, 16, 16
    Cout = 8

    root = jax.random.PRNGKey(0)
    kparam, kin1, kin2 = jax.random.split(root, 3)

    module = ModulatedDeformConvPackPallas(
        in_channels=Cin, out_channels=Cout, kernel_size=3, stride=1, padding=1,
        dilation=1, groups=1, deformable_groups=1, key=kparam)

    input_offset = jax.random.normal(kin1, (N, Cin, H, W), jnp.float32)
    input_real = jax.random.normal(kin2, (N, Cin, H, W), jnp.float32)

    # f32 MXU operands (exact path, works on all chips incl. v5e)
    out, offset = module(input_offset, input_real)
    jax.block_until_ready((out, offset))
    assert out.shape == (N, Cout, H, W)
    assert offset.shape == (N, 2 * 9, H, W)

    out_ref, offset_ref = module.reference(input_offset, input_real)
    assert jnp.allclose(offset, offset_ref, atol=5e-3, rtol=5e-3)
    assert jnp.allclose(out, out_ref, atol=5e-3, rtol=5e-3)

    # bf16 MXU operands (recommended on v6e/v7x); coordinate math stays f32,
    # so only matmul rounding differs -> looser tolerance.
    module.mxu_dtype = jnp.bfloat16
    out_bf, offset_bf = module(input_offset, input_real)
    jax.block_until_ready(out_bf)
    assert jnp.allclose(offset_bf, offset_ref, atol=5e-3, rtol=5e-3)
    assert jnp.allclose(out_bf, out_ref, atol=2e-2, rtol=2e-2)

    print("KERNEL_OK")
</pallas_src>

<mosaic_0001>
module attributes {stable_mosaic.version = 11 : i64} {
  func.func @_conv_gemm_kernel(%arg0: i32, %arg1: i32, %arg2: memref<1x36x256xf32, #tpu.memory_space<vmem>>, %arg3: memref<27x36xf32, #tpu.memory_space<vmem>>, %arg4: memref<27x1xf32, #tpu.memory_space<vmem>>, %arg5: memref<1x27x256xf32, #tpu.memory_space<vmem>>) attributes {dimension_semantics = [#tpu.dimension_semantics<parallel>, #tpu.dimension_semantics<parallel>], iteration_bounds = array<i64: 2, 1>, scalar_prefetch = 0 : i64, scratch_operands = 0 : i64, tpu.core_type = #tpu.core_type<tc>, window_params = [{transform_indices = @transform_0, window_bounds = array<i64: 1, 36, 256>}, {pipeline_mode = #tpu.pipeline_mode<synchronous>, transform_indices = @transform_1, window_bounds = array<i64: 27, 36>}, {pipeline_mode = #tpu.pipeline_mode<synchronous>, transform_indices = @transform_2, window_bounds = array<i64: 27, 1>}, {transform_indices = @transform_3, window_bounds = array<i64: 1, 27, 256>}]} {
    %c0 = arith.constant 0 : index
    %c0_0 = arith.constant 0 : index
    %0 = vector.load %arg3[%c0, %c0_0] : memref<27x36xf32, #tpu.memory_space<vmem>>, vector<27x36xf32>
    %c0_1 = arith.constant 0 : index
    %c0_2 = arith.constant 0 : index
    %c0_3 = arith.constant 0 : index
    %1 = vector.load %arg2[%c0_1, %c0_2, %c0_3] : memref<1x36x256xf32, #tpu.memory_space<vmem>>, vector<1x36x256xf32>
    %2 = vector.shape_cast %1 : vector<1x36x256xf32> to vector<36x256xf32>
    %cst = arith.constant dense<0.000000e+00> : vector<27x256xf32>
    %3 = tpu.matmul %0, %2, %cst {dimension_numbers = #tpu.dot_dimension_numbers<[1], [0], [0], [1], [0, 0, 1, 1], [], []>} : vector<27x36xf32>, vector<36x256xf32>, vector<27x256xf32> -> vector<27x256xf32>
    %c0_4 = arith.constant 0 : index
    %c0_5 = arith.constant 0 : index
    %4 = vector.load %arg4[%c0_4, %c0_5] : memref<27x1xf32, #tpu.memory_space<vmem>>, vector<27x1xf32>
    %5 = vector.broadcast %4 : vector<27x1xf32> to vector<27x256xf32>
    %6 = arith.addf %3, %5 : vector<27x256xf32>
    %c0_6 = arith.constant 0 : index
    %c0_7 = arith.constant 0 : index
    %c0_8 = arith.constant 0 : index
    %7 = vector.load %arg5[%c0_6, %c0_7, %c0_8] : memref<1x27x256xf32, #tpu.memory_space<vmem>>, vector<1x27x256xf32>
    %8 = vector.shape_cast %7 : vector<1x27x256xf32> to vector<27x256xf32>
    %9 = vector.shape_cast %6 : vector<27x256xf32> to vector<1x27x256xf32>
    tpu.vector_store %arg5[%c0_6, %c0_7, %c0_8], %9 {strides = array<i32>} : memref<1x27x256xf32, #tpu.memory_space<vmem>>, vector<1x27x256xf32>,
    return
  }
  func.func @transform_0(%arg0: i32, %arg1: i32) -> (i32, i32, i32) {
    %c0_i32 = arith.constant 0 : i32
    %c0_i32_0 = arith.constant 0 : i32
    return %arg0, %c0_i32, %arg1 : i32, i32, i32
  }
  func.func @transform_1(%arg0: i32, %arg1: i32) -> (i32, i32) {
    %c0_i32 = arith.constant 0 : i32
    %c0_i32_0 = arith.constant 0 : i32
    %c0_i32_1 = arith.constant 0 : i32
    return %c0_i32, %c0_i32_0 : i32, i32
  }
  func.func @transform_2(%arg0: i32, %arg1: i32) -> (i32, i32) {
    %c0_i32 = arith.constant 0 : i32
    %c0_i32_0 = arith.constant 0 : i32
    %c0_i32_1 = arith.constant 0 : i32
    return %c0_i32, %c0_i32_0 : i32, i32
  }
  func.func @transform_3(%arg0: i32, %arg1: i32) -> (i32, i32, i32) {
    %c0_i32 = arith.constant 0 : i32
    %c0_i32_0 = arith.constant 0 : i32
    return %arg0, %c0_i32, %arg1 : i32, i32, i32
  }
}

</mosaic_0001>

<llo_original>
// kernel: tpu_custom_call.1
$region0: #{tpu_custom_call.1}
  #allocation0 [shape = 'u32[]', space=smem, size = 0x4, offset = 0x4, fixed_abs, tag = 'smem constant byte address 0x4 - core index']
  #allocation1 [shape = 'u32[144,128]{1,0:T(1,128)}', space=vmem, size = 0x12000, scoped, tag = 'internal scratch']
  %s0 = inlined_call_operand.vmem [shape: f32[2,36,256], index: 0, kind: input, shape index: {}]
  %s1 = inlined_call_operand.vmem [shape: f32[27,36], index: 1, kind: input, shape index: {}]
  %s2 = inlined_call_operand.vmem [shape: f32[27,1], index: 2, kind: input, shape index: {}]
  %s3 = inlined_call_operand.vmem [shape: f32[2,27,256], index: 3, kind: output, shape index: {}]
  %s4 = sld [smem:[#allocation0]]
  $region45: #{tpu_custom_call.1} parent=0
    _
  %s6 = ssub.s32 1, %s4
  %s7 = scalar_select 0, %s6, %s4
  loop: start=0, step=1, limit=4
  $region2: #{tpu_custom_call.1} parent=0 // loop_pre_header
    _
  $region3: #{tpu_custom_call.1} parent=0 // loop_header
    %s9 = sphi 0, %s13
    %p10 = scmp.ge.s32.totalorder %s9, 4
    %s16 = sphi 0, %s28
    %s17 = sphi 0, %s24
    %s18 = sphi 0, %s16
    %s19 = sphi 0, %s17
    %s20 = sphi 0, %s18
    %s21 = sphi 0, %s19
    %s33 = sphi 0, %s35
    %s36 = sphi 0, %s33
    %s37 = sphi 0, %s36
    %s53 = sphi 0, %s37
    %s57 = sphi 0, %s57
    %s59 = sphi 0, %s57
    %s60 = sphi 0, %s59
    %s74 = sphi 0, %s60
    %s78 = sphi 0, %s78
    %s80 = sphi 0, %s78
    %s81 = sphi 0, %s80
    %s95 = sphi 0, %s81
    %s103 = sphi 0, %s105
    %s106 = sphi 0, %s103
    %s107 = sphi 0, %s106
    %s123 = sphi 0, %s107
  $region4: #{tpu_custom_call.1} parent=0 // loop_header_branch
    %12 = sbr.rel (%p10) target = $region8
  $region5: #{tpu_custom_call.1} parent=0 // loop_body
    %s14 = ssub.s32 %s9, 1
    %s15 = ssub.s32 %s9, 2
    %s22 = sadd.s32 1, %s17
    %p23 = scmp.ge.s32.totalorder %s22, 1
    %s24 = scalar_select %p23, 0, %s22
    %s25 = sadd.s32 1, %s16
    %s26 = scalar_select %p23, %s25, %s16
    %p27 = scmp.ge.s32.totalorder %s26, 2
    %s28 = scalar_select %p27, 0, %s26
    %s29 = ssub.s32 %s16, %s28
    %s30 = ssub.s32 %s17, %s24
    %s31 = sor.u32 %s29, %s30
    %p32 = scmp.eq.s32.totalorder %s31, 0
    %s34 = sadd.s32 %s33, 1
    %s35 = scalar_select %p32, %s33, %s34
    %p38 = pneg %p32
    %p39 = scmp.eq.s32.totalorder %s9, 1
    %p40 = por %p38, %p39
    %p41 = scmp.ne.s32.totalorder %s33, %s36
    %p42 = scmp.eq.s32.totalorder %s9, 0
    %p43 = por %p41, %p42
    %p44 = scmp.ne.s32.totalorder %s33, %s36
    %p45 = scmp.eq.s32.totalorder %s14, 1
    %p46 = por %p44, %p45
    %p47 = scmp.ne.s32.totalorder %s36, %s37
    %p48 = scmp.eq.s32.totalorder %s14, 0
    %p49 = por %p47, %p48
    %p50 = scmp.ne.s32.totalorder %s36, %s37
    %p51 = scmp.eq.s32.totalorder %s15, 1
    %p52 = por %p50, %p51
    %p54 = scmp.ne.s32.totalorder %s37, %s53
    %p55 = scmp.eq.s32.totalorder %s15, 0
    %p56 = por %p54, %p55
    %s58 = sadd.s32 %s57, 1
    %p61 = scmp.eq.s32.totalorder %s9, 1
    %p62 = scmp.ne.s32.totalorder %s57, %s59
    %p63 = scmp.eq.s32.totalorder %s9, 0
    %p64 = por %p62, %p63
    %p65 = scmp.ne.s32.totalorder %s57, %s59
    %p66 = scmp.eq.s32.totalorder %s14, 1
    %p67 = por %p65, %p66
    %p68 = scmp.ne.s32.totalorder %s59, %s60
    %p69 = scmp.eq.s32.totalorder %s14, 0
    %p70 = por %p68, %p69
    %p71 = scmp.ne.s32.totalorder %s59, %s60
    %p72 = scmp.eq.s32.totalorder %s15, 1
    %p73 = por %p71, %p72
    %p75 = scmp.ne.s32.totalorder %s60, %s74
    %p76 = scmp.eq.s32.totalorder %s15, 0
    %p77 = por %p75, %p76
    %s79 = sadd.s32 %s78, 1
    %p82 = scmp.eq.s32.totalorder %s9, 1
    %p83 = scmp.ne.s32.totalorder %s78, %s80
    %p84 = scmp.eq.s32.totalorder %s9, 0
    %p85 = por %p83, %p84
    %p86 = scmp.ne.s32.totalorder %s78, %s80
    %p87 = scmp.eq.s32.totalorder %s14, 1
    %p88 = por %p86, %p87
    %p89 = scmp.ne.s32.totalorder %s80, %s81
    %p90 = scmp.eq.s32.totalorder %s14, 0
    %p91 = por %p89, %p90
    %p92 = scmp.ne.s32.totalorder %s80, %s81
    %p93 = scmp.eq.s32.totalorder %s15, 1
    %p94 = por %p92, %p93
    %p96 = scmp.ne.s32.totalorder %s81, %s95
    %p97 = scmp.eq.s32.totalorder %s15, 0
    %p98 = por %p96, %p97
    %s99 = ssub.s32 %s16, %s28
    %s100 = ssub.s32 %s17, %s24
    %s101 = sor.u32 %s99, %s100
    %p102 = scmp.eq.s32.totalorder %s101, 0
    %s104 = sadd.s32 %s103, 1
    %s105 = scalar_select %p102, %s103, %s104
    %p108 = pneg %p102
    %p109 = scmp.eq.s32.totalorder %s9, 1
    %p110 = por %p108, %p109
    %p111 = scmp.ne.s32.totalorder %s103, %s106
    %p112 = scmp.eq.s32.totalorder %s9, 0
    %p113 = por %p111, %p112
    %p114 = scmp.ne.s32.totalorder %s103, %s106
    %p115 = scmp.eq.s32.totalorder %s14, 1
    %p116 = por %p114, %p115
    %p117 = scmp.ne.s32.totalorder %s106, %s107
    %p118 = scmp.eq.s32.totalorder %s14, 0
    %p119 = por %p117, %p118
    %p120 = scmp.ne.s32.totalorder %s106, %s107
    %p121 = scmp.eq.s32.totalorder %s15, 1
    %p122 = por %p120, %p121
    %p124 = scmp.ne.s32.totalorder %s107, %s123
    %p125 = scmp.eq.s32.totalorder %s15, 0
    %p126 = por %p124, %p125
    %p127 = scmp.le.s32.totalorder 1, %s9
    %p128 = scmp.lt.s32.totalorder %s9, 3
    %p129 = pnand %p127, %p128
    %p130 = pneg %p129
    // Predicated region
    $region9: #{tpu_custom_call.1} parent=5 // pred_check
      _
    $region10: #{tpu_custom_call.1} parent=5 // pred_check_branch
      %132 = sbr.rel (%p129) target = $region12
    $region11: #{tpu_custom_call.1} parent=5 // pred_region
      %s133 = ssub.s32 %s9, 1
      // Predicated region
      $region13: #{tpu_custom_call.1} parent=11 // pred_check
        %p134 = pneg %p70
      $region14: #{tpu_custom_call.1} parent=11 // pred_check_branch
        %136 = sbr.rel (%p134) target = $region16
      $region15: #{tpu_custom_call.1} parent=11 // pred_region
        _
      $region16: #{tpu_custom_call.1} parent=11 // pred_fallthru
        _
      // Predicated region
      $region17: #{tpu_custom_call.1} parent=11 // pred_check
        %p137 = pneg %p91
      $region18: #{tpu_custom_call.1} parent=11 // pred_check_branch
        %139 = sbr.rel (%p137) target = $region20
      $region19: #{tpu_custom_call.1} parent=11 // pred_region
        _
      $region20: #{tpu_custom_call.1} parent=11 // pred_fallthru
        _
    $region12: #{tpu_custom_call.1} parent=5 // pred_fallthru
      _
    %p140 = scmp.lt.s32.totalorder %s9, 2
    // Predicated region
    $region21: #{tpu_custom_call.1} parent=5 // pred_check
      %p141 = pneg %p140
    $region22: #{tpu_custom_call.1} parent=5 // pred_check_branch
      %143 = sbr.rel (%p141) target = $region24
    $region23: #{tpu_custom_call.1} parent=5 // pred_region
      // Predicated region
      $region25: #{tpu_custom_call.1} parent=23 // pred_check
        %p144 = pneg %p43
      $region26: #{tpu_custom_call.1} parent=23 // pred_check_branch
        %146 = sbr.rel (%p144) target = $region28
      $region27: #{tpu_custom_call.1} parent=23 // pred_region
        %s147 = smul.u32 2, %s17
        %p148 = scmp.lt.s32.totalorder %s16, 1
        %s149 = scalar_select %p148, %s16, 1
        %p150 = scmp.lt.s32.totalorder %s147, 1
        %s151 = scalar_select %p150, %s147, 1
        %s152 = smul.addr %s149, 10
        %s153 = sadd.s32 %s151, %s152
        %s154 = smul.addr %s153, 8
        %s155 = scalar_lea.vmem %s0, %s154
        %s156 = smul.u32 2, %s17
      $region28: #{tpu_custom_call.1} parent=23 // pred_fallthru
        _
    $region24: #{tpu_custom_call.1} parent=5 // pred_fallthru
      _
    %p157 = scmp.le.s32.totalorder 1, %s9
    %p158 = scmp.lt.s32.totalorder %s9, 3
    %p159 = pnand %p157, %p158
    %p160 = pneg %p159
    // Predicated region
    $region29: #{tpu_custom_call.1} parent=5 // pred_check
      _
    $region30: #{tpu_custom_call.1} parent=5 // pred_check_branch
      %162 = sbr.rel (%p159) target = $region32
    $region31: #{tpu_custom_call.1} parent=5 // pred_region
      %s163 = ssub.s32 %s9, 1
      %s164 = smul.u32 2, %s19
      %p165 = scmp.lt.s32.totalorder %s18, 1
      %s166 = scalar_select %p165, %s18, 1
      %p167 = scmp.lt.s32.totalorder %s164, 1
      %s168 = scalar_select %p167, %s164, 1
      %s169 = smul.addr %s166, 10
      %s170 = sadd.s32 %s168, %s169
      %s171 = smul.addr %s170, 8
      %s172 = scalar_lea.vmem %s0, %s171
      %p173 = pneg %p49
      %p174 = pneg %p46
      %p175 = pneg %p70
      %p176 = pneg %p67
      %p177 = pneg %p91
      %p178 = pneg %p88
      %p179 = pneg %p119
      %p180 = pneg %p116
      %s181 = smul.u32 2, %s19
      %p182 = scmp.lt.s32.totalorder %s18, 1
      %s183 = scalar_select %p182, %s18, 1
      %p184 = scmp.lt.s32.totalorder %s181, 1
      %s185 = scalar_select %p184, %s181, 1
      %s186 = smul.addr %s183, 8
      %s187 = sadd.s32 %s185, %s186
      %s188 = smul.addr %s187, 8
      %s189 = scalar_lea.vmem %s3, %s188
      %s190 = smul.u32 2, %s19
      %p191 = scmp.lt.s32.totalorder %s18, 1
      %s192 = scalar_select %p191, %s18, 1
      %p193 = scmp.lt.s32.totalorder %s190, 1
      %s194 = scalar_select %p193, %s190, 1
      %s195 = smul.addr %s192, 10
      %s196 = sadd.s32 %s194, %s195
      %s197 = smul.addr %s196, 8
      %s198 = scalar_lea.vmem %s0, %s197
      %s199 = smul.u32 2, %s19
      %s200 = smul.u32 2, %s19
      %p201 = scmp.lt.s32.totalorder %s18, 1
      %s202 = scalar_select %p201, %s18, 1
      %p203 = scmp.lt.s32.totalorder %s200, 1
      %s204 = scalar_select %p203, %s200, 1
      %s205 = smul.addr %s202, 8
      %s206 = sadd.s32 %s204, %s205
      %s207 = smul.addr %s206, 8
      %s208 = scalar_lea.vmem %s3, %s207
      %s209 = smul.u32 2, %s19
      %v210 = vld [vmem:[%s1] sm:$0xff]
      %v211 = vld [vmem:[%s1 + $0x8] sm:$0xff]
      %v212 = vld [vmem:[%s1 + $0x10] sm:$0xff]
      %v213 = vld [vmem:[%s1 + $0x18] sm:$0x7]
      %v214 = vld [vmem:[%s198] sm:$0xff]
      %v215 = vld [vmem:[%s198 + $0x8] sm:$0xff]
      %v216 = vld [vmem:[%s198 + $0x10] sm:$0xff]
      %v217 = vld [vmem:[%s198 + $0x18] sm:$0xff]
      %v218 = vld [vmem:[%s198 + $0x20] sm:$0xff]
      %v219 = vld [vmem:[%s198 + $0x28] sm:$0xff]
      %v220 = vld [vmem:[%s198 + $0x30] sm:$0xff]
      %v221 = vld [vmem:[%s198 + $0x38] sm:$0xff]
      %v222 = vld [vmem:[%s198 + $0x40] sm:$0xf]
      %v223 = vld [vmem:[%s198 + $0x48] sm:$0xf]
      %v224 = vld [vmem:[%s2] sm:$0xff]
      %v225 = vld [vmem:[%s2 + $0x8] sm:$0xff]
      %v226 = vld [vmem:[%s2 + $0x10] sm:$0xff]
      %v227 = vld [vmem:[%s2 + $0x18] sm:$0x7]
      %229 = vset.pattern.permute.xlu0 0
      %230 = vperm.xlu0 %229, %v224
      %v231 = vpop.permute.xlu0 %230
      %234 = vset.pattern.permute.xlu0 0
      %235 = vperm.xlu0 %234, %v225
      %v236 = vpop.permute.xlu0 %235
      %239 = vset.pattern.permute.xlu0 0
      %240 = vperm.xlu0 %239, %v226
      %v241 = vpop.permute.xlu0 %240
      %244 = vset.pattern.permute.xlu0 0
      %245 = vperm.xlu0 %244, %v227
      %v246 = vpop.permute.xlu0 %245
      %vm248 = vcmask 293888
      %v250 = vsel %vm248, %v210, 0
      %v253 = vsel %vm248, %v211, 0
      %v256 = vsel %vm248, %v212, 0
      %v259 = vsel %vm248, %v213, 0
      %vm261 = vcmask 1043456
      %v263 = vsel %vm261, %v222, 0
      %v266 = vsel %vm261, %v223, 0
      %268 = vmatprep.subr.mxu0 %v215
      %269 = vmatpush1.msra.mxu0 %v214
      %270 = vmatprep.subr.mxu0 %v217
      %271 = vmatpush1.msra.mxu0 %v216
      %272 = vmatprep.subr.mxu0 %v219
      %273 = vmatpush1.msra.mxu0 %v218
      %274 = vmatprep.subr.mxu0 %v221
      %275 = vmatpush1.msra.mxu0 %v220
      %276 = vmatprep.subr.mxu0 %v266
      %277 = vmatpush1.msra.mxu0 %v263
      %278 = vmatprep.subr.mxu0 0.0
      %279 = vmatpush1.msra.mxu0 0.0
      %280 = vmatprep.subr.mxu0 0.0
      %281 = vmatpush1.msra.mxu0 0.0
      %282 = vmatprep.subr.mxu0 0.0
      %283 = vmatpush1.msra.mxu0 0.0
      %284 = vmatprep.subr.mxu0 0.0
      %285 = vmatpush1.msra.mxu0 0.0
      %286 = vmatprep.subr.mxu0 0.0
      %287 = vmatpush1.msra.mxu0 0.0
      %288 = vmatprep.subr.mxu0 0.0
      %289 = vmatpush1.msra.mxu0 0.0
      %290 = vmatprep.subr.mxu0 0.0
      %291 = vmatpush1.msra.mxu0 0.0
      %292 = vmatprep.subr.mxu0 0.0
      %293 = vmatpush1.msra.mxu0 0.0
      %294 = vmatprep.subr.mxu0 0.0
      %295 = vmatpush1.msra.mxu0 0.0
      %296 = vmatprep.subr.mxu0 0.0
      %297 = vmatpush1.msra.mxu0 0.0
      %298 = vmatprep.subr.mxu0 0.0
      %299 = vmatpush1.msra.mxu0 0.0
      %300 = vmatprep.subr.mxu0 0.0
      %301 = vmatpush1.msra.mxu0 0.0
      %302 = vmatprep.subr.mxu0 0.0
      %303 = vmatpush1.msra.mxu0 0.0
      %304 = vmatprep.subr.mxu0 0.0
      %305 = vmatpush1.msra.mxu0 0.0
      %306 = vmatprep.subr.mxu0 0.0
      %307 = vmatpush1.msra.mxu0 0.0
      %308 = vmatprep.subr.mxu0 0.0
      %309 = vmatpush1.msra.mxu0 0.0
      %310 = vmatprep.subr.mxu0 0.0
      %311 = vmatpush1.msra.mxu0 0.0
      %312 = vmatprep.subr.mxu0 0.0
      %313 = vmatpush1.msra.mxu0 0.0
      %314 = vmatprep.subr.mxu0 0.0
      %315 = vmatpush1.msra.mxu0 0.0
      %316 = vmatprep.subr.mxu0 0.0
      %317 = vmatpush1.msra.mxu0 0.0
      %318 = vmatprep.subr.mxu0 0.0
      %319 = vmatpush1.msra.mxu0 0.0
      %320 = vmatprep.subr.mxu0 0.0
      %321 = vmatpush1.msra.mxu0 0.0
      %322 = vmatprep.subr.mxu0 0.0
      %323 = vmatpush1.msra.mxu0 0.0
      %324 = vmatprep.subr.mxu0 0.0
      %325 = vmatpush1.msra.mxu0 0.0
      %326 = vmatprep.subr.mxu0 0.0
      %327 = vmatpush1.msra.mxu0 0.0
      %328 = vmatprep.subr.mxu0 0.0
      %329 = vmatpush1.msra.mxu0 0.0
      %330 = vmatprep.subr.mxu0 0.0
      %331 = vmatpush1.msra.mxu0 0.0
      %332 = vmatprep.mubr.f32.mxu0 0.0
      %333 = vmatmul.mubr.f32.gmra.mrb[0].mxu0 %v250
      %v334 = vpop.f32.mrb[0].mxu0
      %v335 = vadd.f32 %v231, %v334
      %v336 = vpop.f32.mrb[0].mxu0
      %v337 = vadd.f32 %v231, %v336
      %338 = vmatprep.mubr.f32.mxu0 0.0
      %339 = vmatmul.mubr.f32.gmra.mrb[0].mxu0 %v253
      %v340 = vpop.f32.mrb[0].mxu0
      %v341 = vadd.f32 %v236, %v340
      %v342 = vpop.f32.mrb[0].mxu0
      %v343 = vadd.f32 %v236, %v342
      %344 = vmatprep.mubr.f32.mxu0 0.0
      %345 = vmatmul.mubr.f32.gmra.mrb[0].mxu0 %v256
      %v346 = vpop.f32.mrb[0].mxu0
      %v347 = vadd.f32 %v241, %v346
      %v348 = vpop.f32.mrb[0].mxu0
      %v349 = vadd.f32 %v241, %v348
      %350 = vmatprep.mubr.f32.mxu0 0.0
      %351 = vmatmul.mubr.f32.gmra.mrb[0].mxu0 %v259
      %v352 = vpop.f32.mrb[0].mxu0
      %v353 = vadd.f32 %v246, %v352
      %v354 = vpop.f32.mrb[0].mxu0
      %v355 = vadd.f32 %v246, %v354
      %356 = vdwg.mxu0
      %357 = vst [vmem:[%s208] sm:$0xff] %v335
      %358 = vst [vmem:[%s208 + $0x8] sm:$0xff] %v337
      %359 = vst [vmem:[%s208 + $0x10] sm:$0xff] %v341
      %360 = vst [vmem:[%s208 + $0x18] sm:$0xff] %v343
      %361 = vst [vmem:[%s208 + $0x20] sm:$0xff] %v347
      %362 = vst [vmem:[%s208 + $0x28] sm:$0xff] %v349
      %363 = vst [vmem:[%s208 + $0x30] sm:$0x7] %v353
      %364 = vst [vmem:[%s208 + $0x38] sm:$0x7] %v355
      %s365 = smul.u32 2, %s19
      %p366 = scmp.lt.s32.totalorder %s18, 1
      %s367 = scalar_select %p366, %s18, 1
      %p368 = scmp.lt.s32.totalorder %s365, 1
      %s369 = scalar_select %p368, %s365, 1
      %s370 = smul.addr %s367, 8
      %s371 = sadd.s32 %s369, %s370
      %s372 = smul.addr %s371, 8
      %s373 = scalar_lea.vmem %s3, %s372
      // Predicated region
      $region33: #{tpu_custom_call.1} parent=31 // pred_check
        %p374 = pneg %p116
      $region34: #{tpu_custom_call.1} parent=31 // pred_check_branch
        %376 = sbr.rel (%p374) target = $region36
      $region35: #{tpu_custom_call.1} parent=31 // pred_region
        %s377 = smul.u32 2, %s19
      $region36: #{tpu_custom_call.1} parent=31 // pred_fallthru
        _
    $region32: #{tpu_custom_call.1} parent=5 // pred_fallthru
      _
    %p378 = scmp.le.s32.totalorder 2, %s9
    // Predicated region
    $region37: #{tpu_custom_call.1} parent=5 // pred_check
      %p379 = pneg %p378
    $region38: #{tpu_custom_call.1} parent=5 // pred_check_branch
      %381 = sbr.rel (%p379) target = $region40
    $region39: #{tpu_custom_call.1} parent=5 // pred_region
      %s382 = ssub.s32 %s9, 2
      // Predicated region
      $region41: #{tpu_custom_call.1} parent=39 // pred_check
        %p383 = pneg %p122
      $region42: #{tpu_custom_call.1} parent=39 // pred_check_branch
        %385 = sbr.rel (%p383) target = $region44
      $region43: #{tpu_custom_call.1} parent=39 // pred_region
        %s386 = smul.u32 2, %s21
        %p387 = scmp.lt.s32.totalorder %s20, 1
        %s388 = scalar_select %p387, %s20, 1
        %p389 = scmp.lt.s32.totalorder %s386, 1
        %s390 = scalar_select %p389, %s386, 1
        %s391 = smul.addr %s388, 8
        %s392 = sadd.s32 %s390, %s391
        %s393 = smul.addr %s392, 8
        %s394 = scalar_lea.vmem %s3, %s393
      $region44: #{tpu_custom_call.1} parent=39 // pred_fallthru
        _
    $region40: #{tpu_custom_call.1} parent=5 // pred_fallthru
      _
  $region6: #{tpu_custom_call.1} parent=0 // loop_footer
    %s13 = sadd.s32 1, %s9
  $region7: #{tpu_custom_call.1} parent=0 // loop_footer_branch
    %8 = sbr.rel target = $region3
  $region8: #{tpu_custom_call.1} parent=0 // loop_exit
    _

</llo_original>
